<compile_context>
chip_gen: v7x
topology: tpu7x:2x2x1
jax: 0.10.0
libtpu: 0.0.40
codegen_flags: <defaults>
</compile_context>

<pallas_src>
import functools

import jax
import jax.numpy as jnp
from jax.experimental import pallas as pl
from jax.experimental.pallas import tpu as pltpu


def _softmax_bridge_kernel(x_ref, o_ref, *, message_size, voc_size, inv_tau):
    # x_ref / o_ref: (block_rows, message_size * voc_size) in VMEM (lane-dense).
    # Each row holds `message_size` independent softmax groups of `voc_size`
    # consecutive lanes.  message_size is small & static -> unrolled loop.
    for g in range(message_size):
        lo = g * voc_size
        xg = x_ref[:, lo:lo + voc_size]                 # (block_rows, voc_size)
        if xg.dtype != jnp.float32:
            xg = xg.astype(jnp.float32)                 # only cast when needed
        mg = jnp.max(xg, axis=-1, keepdims=True)        # exact per-group max
        eg = jnp.exp((xg - mg) * inv_tau)               # fused temperature scale
        dg = jnp.sum(eg, axis=-1, keepdims=True)
        # Exact reciprocal (approx=True would break the 1e-5 tolerance).
        yg = eg * pl.reciprocal(dg, approx=False)
        o_ref[:, lo:lo + voc_size] = yg.astype(o_ref.dtype)


def softmax_bridge(x, message_size, voc_size, tau, block_rows=None):
    """x: (B, message_size * voc_size). Returns softmax over each voc_size group."""
    B, F = x.shape
    assert F == message_size * voc_size
    itemsize = jnp.dtype(x.dtype).itemsize

    if block_rows is None:
        # Target ~2 MiB per input block: big enough to amortize per-grid-step
        # overhead, small enough that double-buffered in+out (~4 blocks) fits
        # comfortably in VMEM on every generation (incl. v7x's 64 MiB).
        target = (2 * 1024 * 1024) // max(F * itemsize, 1)
        block_rows = max(8, (target // 8) * 8)
    block_rows = min(block_rows, B)
    if block_rows != B:
        # Keep the second-to-last block dim sublane-aligned (multiple of 8)
        # unless it spans the whole batch (full-dim blocks are always legal).
        block_rows = max(8, (block_rows // 8) * 8)

    grid = pl.cdiv(B, block_rows)   # no padding / no output slice needed

    kernel = functools.partial(
        _softmax_bridge_kernel,
        message_size=message_size,
        voc_size=voc_size,
        inv_tau=1.0 / float(tau),
    )

    block_bytes = block_rows * F * itemsize
    # in + out, double-buffered, plus headroom for in-kernel temporaries.
    vmem_limit = max(32 * 1024 * 1024,
                     min(100 * 1024 * 1024, 4 * block_bytes + 8 * 1024 * 1024))

    return pl.pallas_call(
        kernel,
        out_shape=jax.ShapeDtypeStruct((B, F), x.dtype),
        grid_spec=pltpu.PrefetchScalarGridSpec(
            num_scalar_prefetch=0,
            grid=(grid,),
            in_specs=[pl.BlockSpec((block_rows, F), lambda i: (i, 0))],
            out_specs=pl.BlockSpec((block_rows, F), lambda i: (i, 0)),
        ),
        compiler_params=pltpu.CompilerParams(
            dimension_semantics=("parallel",),   # shards across TCs on v7x
            vmem_limit_bytes=vmem_limit,
        ),
    )(x)


def softmax_bridge_ref(x, message_size, voc_size, tau):
    B = x.shape[0]
    logits = x.reshape(-1, message_size, voc_size) / tau
    return jax.nn.softmax(logits, axis=-1).reshape(B, -1)


if __name__ == "__main__":
    # SoftmaxBridge has no learnable parameters; only hyperparameters.
    message_size = 8
    voc_size = 32
    tau = 0.5
    B = 8

    key = jax.random.PRNGKey(0)
    x = jax.random.normal(key, (B, message_size * voc_size), dtype=jnp.float32)

    out = softmax_bridge(x, message_size, voc_size, tau)
    out = jax.block_until_ready(out)

    ref = softmax_bridge_ref(x, message_size, voc_size, tau)
    assert out.shape == (B, message_size * voc_size)
    assert jnp.allclose(out, ref, atol=1e-5, rtol=1e-5)

    print("KERNEL_OK")
</pallas_src>

<mosaic_0001>
module attributes {stable_mosaic.version = 11 : i64} {
  func.func @_softmax_bridge_kernel(%arg0: i32, %arg1: memref<8x256xf32, #tpu.memory_space<vmem>>, %arg2: memref<8x256xf32, #tpu.memory_space<vmem>>) attributes {dimension_semantics = [#tpu.dimension_semantics<parallel>], iteration_bounds = array<i64: 1>, scalar_prefetch = 0 : i64, scratch_operands = 0 : i64, tpu.core_type = #tpu.core_type<tc>, window_params = [{transform_indices = @transform_0, window_bounds = array<i64: 8, 256>}, {transform_indices = @transform_1, window_bounds = array<i64: 8, 256>}]} {
    %c0 = arith.constant 0 : index
    %c0_0 = arith.constant 0 : index
    %0 = vector.load %arg1[%c0, %c0_0] : memref<8x256xf32, #tpu.memory_space<vmem>>, vector<8x32xf32>
    %cst = arith.constant dense<0xFF800000> : vector<8xf32>
    %1 = vector.multi_reduction <maximumf>, %0, %cst [1] : vector<8x32xf32> to vector<8xf32>
    %2 = vector.shape_cast %1 : vector<8xf32> to vector<8x1xf32>
    %3 = vector.broadcast %2 : vector<8x1xf32> to vector<8x32xf32>
    %4 = arith.subf %0, %3 : vector<8x32xf32>
    %cst_1 = arith.constant 2.000000e+00 : f32
    %5 = vector.broadcast %cst_1 : f32 to vector<8x32xf32>
    %6 = arith.mulf %4, %5 : vector<8x32xf32>
    %7 = math.exp %6 : vector<8x32xf32>
    %cst_2 = arith.constant dense<0.000000e+00> : vector<8xf32>
    %8 = vector.multi_reduction <add>, %7, %cst_2 [1] : vector<8x32xf32> to vector<8xf32>
    %9 = vector.shape_cast %8 : vector<8xf32> to vector<8x1xf32>
    %10 = tpu.reciprocal %9 : vector<8x1xf32> -> vector<8x1xf32>
    %11 = vector.broadcast %10 : vector<8x1xf32> to vector<8x32xf32>
    %12 = arith.mulf %7, %11 : vector<8x32xf32>
    %c0_3 = arith.constant 0 : index
    %c0_4 = arith.constant 0 : index
    %13 = vector.load %arg2[%c0_3, %c0_4] : memref<8x256xf32, #tpu.memory_space<vmem>>, vector<8x32xf32>
    tpu.vector_store %arg2[%c0_3, %c0_4], %12 {strides = array<i32>} : memref<8x256xf32, #tpu.memory_space<vmem>>, vector<8x32xf32>,
    %c0_5 = arith.constant 0 : index
    %c32 = arith.constant 32 : index
    %14 = vector.load %arg1[%c0_5, %c32] : memref<8x256xf32, #tpu.memory_space<vmem>>, vector<8x32xf32>
    %cst_6 = arith.constant dense<0xFF800000> : vector<8xf32>
    %15 = vector.multi_reduction <maximumf>, %14, %cst_6 [1] : vector<8x32xf32> to vector<8xf32>
    %16 = vector.shape_cast %15 : vector<8xf32> to vector<8x1xf32>
    %17 = vector.broadcast %16 : vector<8x1xf32> to vector<8x32xf32>
    %18 = arith.subf %14, %17 : vector<8x32xf32>
    %cst_7 = arith.constant 2.000000e+00 : f32
    %19 = vector.broadcast %cst_7 : f32 to vector<8x32xf32>
    %20 = arith.mulf %18, %19 : vector<8x32xf32>
    %21 = math.exp %20 : vector<8x32xf32>
    %cst_8 = arith.constant dense<0.000000e+00> : vector<8xf32>
    %22 = vector.multi_reduction <add>, %21, %cst_8 [1] : vector<8x32xf32> to vector<8xf32>
    %23 = vector.shape_cast %22 : vector<8xf32> to vector<8x1xf32>
    %24 = tpu.reciprocal %23 : vector<8x1xf32> -> vector<8x1xf32>
    %25 = vector.broadcast %24 : vector<8x1xf32> to vector<8x32xf32>
    %26 = arith.mulf %21, %25 : vector<8x32xf32>
    %c0_9 = arith.constant 0 : index
    %c32_10 = arith.constant 32 : index
    %27 = vector.load %arg2[%c0_9, %c32_10] : memref<8x256xf32, #tpu.memory_space<vmem>>, vector<8x32xf32>
    tpu.vector_store %arg2[%c0_9, %c32_10], %26 {strides = array<i32>} : memref<8x256xf32, #tpu.memory_space<vmem>>, vector<8x32xf32>,
    %c0_11 = arith.constant 0 : index
    %c64 = arith.constant 64 : index
    %28 = vector.load %arg1[%c0_11, %c64] : memref<8x256xf32, #tpu.memory_space<vmem>>, vector<8x32xf32>
    %cst_12 = arith.constant dense<0xFF800000> : vector<8xf32>
    %29 = vector.multi_reduction <maximumf>, %28, %cst_12 [1] : vector<8x32xf32> to vector<8xf32>
    %30 = vector.shape_cast %29 : vector<8xf32> to vector<8x1xf32>
    %31 = vector.broadcast %30 : vector<8x1xf32> to vector<8x32xf32>
    %32 = arith.subf %28, %31 : vector<8x32xf32>
    %cst_13 = arith.constant 2.000000e+00 : f32
    %33 = vector.broadcast %cst_13 : f32 to vector<8x32xf32>
    %34 = arith.mulf %32, %33 : vector<8x32xf32>
    %35 = math.exp %34 : vector<8x32xf32>
    %cst_14 = arith.constant dense<0.000000e+00> : vector<8xf32>
    %36 = vector.multi_reduction <add>, %35, %cst_14 [1] : vector<8x32xf32> to vector<8xf32>
    %37 = vector.shape_cast %36 : vector<8xf32> to vector<8x1xf32>
    %38 = tpu.reciprocal %37 : vector<8x1xf32> -> vector<8x1xf32>
    %39 = vector.broadcast %38 : vector<8x1xf32> to vector<8x32xf32>
    %40 = arith.mulf %35, %39 : vector<8x32xf32>
    %c0_15 = arith.constant 0 : index
    %c64_16 = arith.constant 64 : index
    %41 = vector.load %arg2[%c0_15, %c64_16] : memref<8x256xf32, #tpu.memory_space<vmem>>, vector<8x32xf32>
    tpu.vector_store %arg2[%c0_15, %c64_16], %40 {strides = array<i32>} : memref<8x256xf32, #tpu.memory_space<vmem>>, vector<8x32xf32>,
    %c0_17 = arith.constant 0 : index
    %c96 = arith.constant 96 : index
    %42 = vector.load %arg1[%c0_17, %c96] : memref<8x256xf32, #tpu.memory_space<vmem>>, vector<8x32xf32>
    %cst_18 = arith.constant dense<0xFF800000> : vector<8xf32>
    %43 = vector.multi_reduction <maximumf>, %42, %cst_18 [1] : vector<8x32xf32> to vector<8xf32>
    %44 = vector.shape_cast %43 : vector<8xf32> to vector<8x1xf32>
    %45 = vector.broadcast %44 : vector<8x1xf32> to vector<8x32xf32>
    %46 = arith.subf %42, %45 : vector<8x32xf32>
    %cst_19 = arith.constant 2.000000e+00 : f32
    %47 = vector.broadcast %cst_19 : f32 to vector<8x32xf32>
    %48 = arith.mulf %46, %47 : vector<8x32xf32>
    %49 = math.exp %48 : vector<8x32xf32>
    %cst_20 = arith.constant dense<0.000000e+00> : vector<8xf32>
    %50 = vector.multi_reduction <add>, %49, %cst_20 [1] : vector<8x32xf32> to vector<8xf32>
    %51 = vector.shape_cast %50 : vector<8xf32> to vector<8x1xf32>
    %52 = tpu.reciprocal %51 : vector<8x1xf32> -> vector<8x1xf32>
    %53 = vector.broadcast %52 : vector<8x1xf32> to vector<8x32xf32>
    %54 = arith.mulf %49, %53 : vector<8x32xf32>
    %c0_21 = arith.constant 0 : index
    %c96_22 = arith.constant 96 : index
    %55 = vector.load %arg2[%c0_21, %c96_22] : memref<8x256xf32, #tpu.memory_space<vmem>>, vector<8x32xf32>
    tpu.vector_store %arg2[%c0_21, %c96_22], %54 {strides = array<i32>} : memref<8x256xf32, #tpu.memory_space<vmem>>, vector<8x32xf32>,
    %c0_23 = arith.constant 0 : index
    %c128 = arith.constant 128 : index
    %56 = vector.load %arg1[%c0_23, %c128] : memref<8x256xf32, #tpu.memory_space<vmem>>, vector<8x32xf32>
    %cst_24 = arith.constant dense<0xFF800000> : vector<8xf32>
    %57 = vector.multi_reduction <maximumf>, %56, %cst_24 [1] : vector<8x32xf32> to vector<8xf32>
    %58 = vector.shape_cast %57 : vector<8xf32> to vector<8x1xf32>
    %59 = vector.broadcast %58 : vector<8x1xf32> to vector<8x32xf32>
    %60 = arith.subf %56, %59 : vector<8x32xf32>
    %cst_25 = arith.constant 2.000000e+00 : f32
    %61 = vector.broadcast %cst_25 : f32 to vector<8x32xf32>
    %62 = arith.mulf %60, %61 : vector<8x32xf32>
    %63 = math.exp %62 : vector<8x32xf32>
    %cst_26 = arith.constant dense<0.000000e+00> : vector<8xf32>
    %64 = vector.multi_reduction <add>, %63, %cst_26 [1] : vector<8x32xf32> to vector<8xf32>
    %65 = vector.shape_cast %64 : vector<8xf32> to vector<8x1xf32>
    %66 = tpu.reciprocal %65 : vector<8x1xf32> -> vector<8x1xf32>
    %67 = vector.broadcast %66 : vector<8x1xf32> to vector<8x32xf32>
    %68 = arith.mulf %63, %67 : vector<8x32xf32>
    %c0_27 = arith.constant 0 : index
    %c128_28 = arith.constant 128 : index
    %69 = vector.load %arg2[%c0_27, %c128_28] : memref<8x256xf32, #tpu.memory_space<vmem>>, vector<8x32xf32>
    tpu.vector_store %arg2[%c0_27, %c128_28], %68 {strides = array<i32>} : memref<8x256xf32, #tpu.memory_space<vmem>>, vector<8x32xf32>,
    %c0_29 = arith.constant 0 : index
    %c160 = arith.constant 160 : index
    %70 = vector.load %arg1[%c0_29, %c160] : memref<8x256xf32, #tpu.memory_space<vmem>>, vector<8x32xf32>
    %cst_30 = arith.constant dense<0xFF800000> : vector<8xf32>
    %71 = vector.multi_reduction <maximumf>, %70, %cst_30 [1] : vector<8x32xf32> to vector<8xf32>
    %72 = vector.shape_cast %71 : vector<8xf32> to vector<8x1xf32>
    %73 = vector.broadcast %72 : vector<8x1xf32> to vector<8x32xf32>
    %74 = arith.subf %70, %73 : vector<8x32xf32>
    %cst_31 = arith.constant 2.000000e+00 : f32
    %75 = vector.broadcast %cst_31 : f32 to vector<8x32xf32>
    %76 = arith.mulf %74, %75 : vector<8x32xf32>
    %77 = math.exp %76 : vector<8x32xf32>
    %cst_32 = arith.constant dense<0.000000e+00> : vector<8xf32>
    %78 = vector.multi_reduction <add>, %77, %cst_32 [1] : vector<8x32xf32> to vector<8xf32>
    %79 = vector.shape_cast %78 : vector<8xf32> to vector<8x1xf32>
    %80 = tpu.reciprocal %79 : vector<8x1xf32> -> vector<8x1xf32>
    %81 = vector.broadcast %80 : vector<8x1xf32> to vector<8x32xf32>
    %82 = arith.mulf %77, %81 : vector<8x32xf32>
    %c0_33 = arith.constant 0 : index
    %c160_34 = arith.constant 160 : index
    %83 = vector.load %arg2[%c0_33, %c160_34] : memref<8x256xf32, #tpu.memory_space<vmem>>, vector<8x32xf32>
    tpu.vector_store %arg2[%c0_33, %c160_34], %82 {strides = array<i32>} : memref<8x256xf32, #tpu.memory_space<vmem>>, vector<8x32xf32>,
    %c0_35 = arith.constant 0 : index
    %c192 = arith.constant 192 : index
    %84 = vector.load %arg1[%c0_35, %c192] : memref<8x256xf32, #tpu.memory_space<vmem>>, vector<8x32xf32>
    %cst_36 = arith.constant dense<0xFF800000> : vector<8xf32>
    %85 = vector.multi_reduction <maximumf>, %84, %cst_36 [1] : vector<8x32xf32> to vector<8xf32>
    %86 = vector.shape_cast %85 : vector<8xf32> to vector<8x1xf32>
    %87 = vector.broadcast %86 : vector<8x1xf32> to vector<8x32xf32>
    %88 = arith.subf %84, %87 : vector<8x32xf32>
    %cst_37 = arith.constant 2.000000e+00 : f32
    %89 = vector.broadcast %cst_37 : f32 to vector<8x32xf32>
    %90 = arith.mulf %88, %89 : vector<8x32xf32>
    %91 = math.exp %90 : vector<8x32xf32>
    %cst_38 = arith.constant dense<0.000000e+00> : vector<8xf32>
    %92 = vector.multi_reduction <add>, %91, %cst_38 [1] : vector<8x32xf32> to vector<8xf32>
    %93 = vector.shape_cast %92 : vector<8xf32> to vector<8x1xf32>
    %94 = tpu.reciprocal %93 : vector<8x1xf32> -> vector<8x1xf32>
    %95 = vector.broadcast %94 : vector<8x1xf32> to vector<8x32xf32>
    %96 = arith.mulf %91, %95 : vector<8x32xf32>
    %c0_39 = arith.constant 0 : index
    %c192_40 = arith.constant 192 : index
    %97 = vector.load %arg2[%c0_39, %c192_40] : memref<8x256xf32, #tpu.memory_space<vmem>>, vector<8x32xf32>
    tpu.vector_store %arg2[%c0_39, %c192_40], %96 {strides = array<i32>} : memref<8x256xf32, #tpu.memory_space<vmem>>, vector<8x32xf32>,
    %c0_41 = arith.constant 0 : index
    %c224 = arith.constant 224 : index
    %98 = vector.load %arg1[%c0_41, %c224] : memref<8x256xf32, #tpu.memory_space<vmem>>, vector<8x32xf32>
    %cst_42 = arith.constant dense<0xFF800000> : vector<8xf32>
    %99 = vector.multi_reduction <maximumf>, %98, %cst_42 [1] : vector<8x32xf32> to vector<8xf32>
    %100 = vector.shape_cast %99 : vector<8xf32> to vector<8x1xf32>
    %101 = vector.broadcast %100 : vector<8x1xf32> to vector<8x32xf32>
    %102 = arith.subf %98, %101 : vector<8x32xf32>
    %cst_43 = arith.constant 2.000000e+00 : f32
    %103 = vector.broadcast %cst_43 : f32 to vector<8x32xf32>
    %104 = arith.mulf %102, %103 : vector<8x32xf32>
    %105 = math.exp %104 : vector<8x32xf32>
    %cst_44 = arith.constant dense<0.000000e+00> : vector<8xf32>
    %106 = vector.multi_reduction <add>, %105, %cst_44 [1] : vector<8x32xf32> to vector<8xf32>
    %107 = vector.shape_cast %106 : vector<8xf32> to vector<8x1xf32>
    %108 = tpu.reciprocal %107 : vector<8x1xf32> -> vector<8x1xf32>
    %109 = vector.broadcast %108 : vector<8x1xf32> to vector<8x32xf32>
    %110 = arith.mulf %105, %109 : vector<8x32xf32>
    %c0_45 = arith.constant 0 : index
    %c224_46 = arith.constant 224 : index
    %111 = vector.load %arg2[%c0_45, %c224_46] : memref<8x256xf32, #tpu.memory_space<vmem>>, vector<8x32xf32>
    tpu.vector_store %arg2[%c0_45, %c224_46], %110 {strides = array<i32>} : memref<8x256xf32, #tpu.memory_space<vmem>>, vector<8x32xf32>,
    return
  }
  func.func @transform_0(%arg0: i32) -> (i32, i32) {
    %c0_i32 = arith.constant 0 : i32
    %c0_i32_0 = arith.constant 0 : i32
    return %arg0, %c0_i32 : i32, i32
  }
  func.func @transform_1(%arg0: i32) -> (i32, i32) {
    %c0_i32 = arith.constant 0 : i32
    %c0_i32_0 = arith.constant 0 : i32
    return %arg0, %c0_i32 : i32, i32
  }
}

</mosaic_0001>

<llo_original>
// kernel: tpu_custom_call.1
$region0: #{tpu_custom_call.1}
  #allocation0 [shape = 'u32[]', space=smem, size = 0x4, offset = 0x4, fixed_abs, tag = 'smem constant byte address 0x4 - core index']
  #allocation1 [shape = 'u32[144,128]{1,0:T(1,128)}', space=vmem, size = 0x12000, scoped, tag = 'internal scratch']
  %s0 = inlined_call_operand.hbm [shape: f32[8,256], index: 0, kind: input, shape index: {}]
  %s1 = inlined_call_operand.hbm [shape: f32[8,256], index: 1, kind: output, shape index: {}]
  %s2 = sld [smem:[#allocation0]]
  $region18: #{tpu_custom_call.1} parent=0
    _
  %s4 = ssub.s32 1, %s2
  %s5 = scalar_select 0, %s4, %s2
  $region1: #{tpu_custom_call.1} parent=0
    #allocation2 [shape = 'u8[8192]{0}', space=vmem, size = 0x2000, scoped, tag = 'input window, operand 0, single buffered']
    #allocation3 [shape = 's32[1]{0}', space=sflag, size = 0x4, scoped, tag = 'scoped memory for tpu_custom_call.1']
    #allocation4 [shape = 's32[1]{0}', space=sflag, size = 0x4, scoped, tag = 'scoped memory for tpu_custom_call.1']
    #allocation5 [shape = 'u8[8192]{0}', space=vmem, size = 0x2000, scoped, tag = 'output window, operand 0, single buffered']
    %6 = vsyncpa [#allocation3], 0
    %7 = vsyncpa [#allocation4], 0
    // Predicated region
    $region2: #{tpu_custom_call.1} parent=1 // pred_check
      _
    $region3: #{tpu_custom_call.1} parent=1 // pred_check_branch
      %9 = sbr.rel (0) target = $region5
    $region4: #{tpu_custom_call.1} parent=1 // pred_region
      %s11 = ssub.s32 256, 256
      %12 = vsyncadd [#allocation3], %s11
      %s14 = sshll.u32 [#allocation2], 4
      %s15 = int_to_ptr.vmem [resolvable:$true] %s14
      %17 = dma.hbm_to_vmem [thread:$0]  %s0, 256, %s15, [#allocation3]
    $region5: #{tpu_custom_call.1} parent=1 // pred_fallthru
      _
    // Predicated region
    $region6: #{tpu_custom_call.1} parent=1 // pred_check
      _
    $region7: #{tpu_custom_call.1} parent=1 // pred_check_branch
      %19 = sbr.rel (0) target = $region9
    $region8: #{tpu_custom_call.1} parent=1 // pred_region
      %20 = dma.done [#allocation3], 256
    $region9: #{tpu_custom_call.1} parent=1 // pred_fallthru
      _
    %v21 = vld [vmem:[#allocation2] sm:$0xff]
    %vm22 = vcmask 261120
    %v23 = vsel %vm22, %v21, -inf
    %24 = vmax.xlane.f32.xlu0 %v23
    %v25 = vpop.xlane.xlu0 %24
    %v26 = vsub.f32 %v21, %v25
    %v27 = vmul.f32 %v26, 2.0
    %v28 = vmul.f32 %v27, 1.442695
    %v29 = vpow.pop %v28
    %v30 = vsel %vm22, %v29, 0.0
    %31 = vadd.xlane.f32.xlu0 %v30
    %v32 = vpop.xlane.xlu0 %31
    %v33 = vrcp.pop %v32
    %v34 = vmul.f32 %v29, %v33
    %35 = vst.msk [vmem:[#allocation5] sm:$0xff] %vm22, %v34
    %v36 = vld [vmem:[#allocation2] sm:$0xff]
    %vm37 = vcmask 523520
    %v38 = vsel %vm37, %v36, -inf
    %39 = vmax.xlane.f32.xlu0 %v38
    %v40 = vpop.xlane.xlu0 %39
    %v41 = vsub.f32 %v36, %v40
    %v42 = vmul.f32 %v41, 2.0
    %v43 = vmul.f32 %v42, 1.442695
    %v44 = vpow.pop %v43
    %46 = vrot.lane.b32.xlu0 %v44, 96
    %v47 = vpop.permute.xlu0 %46
    %v49 = vsel %vm22, %v47, 0.0
    %50 = vadd.xlane.f32.xlu0 %v49
    %v51 = vpop.xlane.xlu0 %50
    %v52 = vrcp.pop %v51
    %v53 = vmul.f32 %v44, %v52
    %54 = vst.msk [vmem:[#allocation5] sm:$0xff] %vm37, %v53
    %v55 = vld [vmem:[#allocation2] sm:$0xff]
    %vm56 = vcmask 785920
    %v57 = vsel %vm56, %v55, -inf
    %58 = vmax.xlane.f32.xlu0 %v57
    %v59 = vpop.xlane.xlu0 %58
    %v60 = vsub.f32 %v55, %v59
    %v61 = vmul.f32 %v60, 2.0
    %v62 = vmul.f32 %v61, 1.442695
    %v63 = vpow.pop %v62
    %65 = vrot.lane.b32.xlu0 %v63, 64
    %v66 = vpop.permute.xlu0 %65
    %v68 = vsel %vm22, %v66, 0.0
    %69 = vadd.xlane.f32.xlu0 %v68
    %v70 = vpop.xlane.xlu0 %69
    %v71 = vrcp.pop %v70
    %v72 = vmul.f32 %v63, %v71
    %73 = vst.msk [vmem:[#allocation5] sm:$0xff] %vm56, %v72
    %v74 = vld [vmem:[#allocation2] sm:$0xff]
    %vm75 = vcmask 1048320
    %v76 = vsel %vm75, %v74, -inf
    %77 = vmax.xlane.f32.xlu0 %v76
    %v78 = vpop.xlane.xlu0 %77
    %v79 = vsub.f32 %v74, %v78
    %v80 = vmul.f32 %v79, 2.0
    %v81 = vmul.f32 %v80, 1.442695
    %v82 = vpow.pop %v81
    %84 = vrot.lane.b32.xlu0 %v82, 32
    %v85 = vpop.permute.xlu0 %84
    %v87 = vsel %vm22, %v85, 0.0
    %88 = vadd.xlane.f32.xlu0 %v87
    %v89 = vpop.xlane.xlu0 %88
    %v90 = vrcp.pop %v89
    %v91 = vmul.f32 %v82, %v90
    %92 = vst.msk [vmem:[#allocation5] sm:$0xff] %vm75, %v91
    %v93 = vld [vmem:[#allocation2 + $0x8] sm:$0xff]
    %v94 = vsel %vm22, %v93, -inf
    %95 = vmax.xlane.f32.xlu0 %v94
    %v96 = vpop.xlane.xlu0 %95
    %v97 = vsub.f32 %v93, %v96
    %v98 = vmul.f32 %v97, 2.0
    %v99 = vmul.f32 %v98, 1.442695
    %v100 = vpow.pop %v99
    %v101 = vsel %vm22, %v100, 0.0
    %102 = vadd.xlane.f32.xlu0 %v101
    %v103 = vpop.xlane.xlu0 %102
    %v104 = vrcp.pop %v103
    %v105 = vmul.f32 %v100, %v104
    %106 = vst.msk [vmem:[#allocation5 + $0x8] sm:$0xff] %vm22, %v105
    %v107 = vld [vmem:[#allocation2 + $0x8] sm:$0xff]
    %v108 = vsel %vm37, %v107, -inf
    %109 = vmax.xlane.f32.xlu0 %v108
    %v110 = vpop.xlane.xlu0 %109
    %v111 = vsub.f32 %v107, %v110
    %v112 = vmul.f32 %v111, 2.0
    %v113 = vmul.f32 %v112, 1.442695
    %v114 = vpow.pop %v113
    %116 = vrot.lane.b32.xlu0 %v114, 96
    %v117 = vpop.permute.xlu0 %116
    %v119 = vsel %vm22, %v117, 0.0
    %120 = vadd.xlane.f32.xlu0 %v119
    %v121 = vpop.xlane.xlu0 %120
    %v122 = vrcp.pop %v121
    %v123 = vmul.f32 %v114, %v122
    %124 = vst.msk [vmem:[#allocation5 + $0x8] sm:$0xff] %vm37, %v123
    %v125 = vld [vmem:[#allocation2 + $0x8] sm:$0xff]
    %v126 = vsel %vm56, %v125, -inf
    %127 = vmax.xlane.f32.xlu0 %v126
    %v128 = vpop.xlane.xlu0 %127
    %v129 = vsub.f32 %v125, %v128
    %v130 = vmul.f32 %v129, 2.0
    %v131 = vmul.f32 %v130, 1.442695
    %v132 = vpow.pop %v131
    %134 = vrot.lane.b32.xlu0 %v132, 64
    %v135 = vpop.permute.xlu0 %134
    %v137 = vsel %vm22, %v135, 0.0
    %138 = vadd.xlane.f32.xlu0 %v137
    %v139 = vpop.xlane.xlu0 %138
    %v140 = vrcp.pop %v139
    %v141 = vmul.f32 %v132, %v140
    %142 = vst.msk [vmem:[#allocation5 + $0x8] sm:$0xff] %vm56, %v141
    %v143 = vld [vmem:[#allocation2 + $0x8] sm:$0xff]
    %v144 = vsel %vm75, %v143, -inf
    %145 = vmax.xlane.f32.xlu0 %v144
    %v146 = vpop.xlane.xlu0 %145
    %v147 = vsub.f32 %v143, %v146
    %v148 = vmul.f32 %v147, 2.0
    %v149 = vmul.f32 %v148, 1.442695
    %v150 = vpow.pop %v149
    %152 = vrot.lane.b32.xlu0 %v150, 32
    %v153 = vpop.permute.xlu0 %152
    %v155 = vsel %vm22, %v153, 0.0
    %156 = vadd.xlane.f32.xlu0 %v155
    %v157 = vpop.xlane.xlu0 %156
    %v158 = vrcp.pop %v157
    %v159 = vmul.f32 %v150, %v158
    %160 = vst.msk [vmem:[#allocation5 + $0x8] sm:$0xff] %vm75, %v159
    // Predicated region
    $region10: #{tpu_custom_call.1} parent=1 // pred_check
      _
    $region11: #{tpu_custom_call.1} parent=1 // pred_check_branch
      %162 = sbr.rel (0) target = $region13
    $region12: #{tpu_custom_call.1} parent=1 // pred_region
      %s164 = ssub.s32 256, 256
      %165 = vsyncadd [#allocation4], %s164
      %s167 = sshll.u32 [#allocation5], 4
      %s168 = int_to_ptr.vmem [resolvable:$true] %s167
      %170 = dma.vmem_to_hbm [thread:$0]  %s168, 256, %s1, [#allocation4]
    $region13: #{tpu_custom_call.1} parent=1 // pred_fallthru
      _
    // Predicated region
    $region14: #{tpu_custom_call.1} parent=1 // pred_check
      _
    $region15: #{tpu_custom_call.1} parent=1 // pred_check_branch
      %172 = sbr.rel (0) target = $region17
    $region16: #{tpu_custom_call.1} parent=1 // pred_region
      %173 = dma.done [#allocation4], 256
    $region17: #{tpu_custom_call.1} parent=1 // pred_fallthru
      _
    %174 = vsyncpa [#allocation3], 1
    %175 = vsyncpa [#allocation4], 1

</llo_original>
